<compile_context>
chip_gen: v6e
topology: v6e:2x2x1
jax: 0.10.0
libtpu: 0.0.40
codegen_flags: <defaults>
</compile_context>

<pallas_src>
import jax
import jax.numpy as jnp
from jax.experimental import pallas as pl
from jax.experimental.pallas import tpu as pltpu


def edge_decoder_kernel(row_ref, col_ref, pu_ref, pm_ref, b1_ref, w2_ref,
                        b2_ref, o_ref):
    # row_ref, col_ref : (1, TILE_E) int32  edge endpoints for this tile
    # pu_ref           : (2H, U_pad) bf16   (z_user  @ W1[:H]).T, VMEM-resident
    # pm_ref           : (2H, M_pad) bf16   (z_movie @ W1[H:]).T, VMEM-resident
    # b1_ref           : (2H, 1)     f32    lin1 bias as a column
    # w2_ref           : (2H, 1)     f32    lin2 weight as a column
    # b2_ref           : (1, 1)      f32    lin2 bias (SMEM scalar)
    # o_ref            : (1, TILE_E) f32    lane-dense scores
    u_pad = pu_ref.shape[1]
    m_pad = pm_ref.shape[1]
    tile_e = row_ref.shape[1]

    # Fused gather: one-hot selection matmul against the VMEM-resident tables.
    iota_u = jax.lax.broadcasted_iota(jnp.int32, (u_pad, tile_e), 0)
    onehot_u = jnp.where(iota_u == row_ref[...], 1.0, 0.0).astype(jnp.bfloat16)
    iota_m = jax.lax.broadcasted_iota(jnp.int32, (m_pad, tile_e), 0)
    onehot_m = jnp.where(iota_m == col_ref[...], 1.0, 0.0).astype(jnp.bfloat16)

    # h[:, e] = PU[row[e]] + PM[col[e]] + b1   -> (2H, TILE_E), edges on lanes.
    h = jnp.dot(pu_ref[...], onehot_u, preferred_element_type=jnp.float32)
    h = h + jnp.dot(pm_ref[...], onehot_m, preferred_element_type=jnp.float32)
    h = jnp.maximum(h + b1_ref[...], 0.0)

    # TODO(synk): training-mode dropout(p=0.5) via pltpu.prng_seed /
    # pltpu.prng_random_bits; eval mode (training=False) => identity.

    # lin2: per-lane multiply + sublane reduction -> lane-dense (1, TILE_E).
    o_ref[...] = jnp.sum(h * w2_ref[...], axis=0, keepdims=True) + b2_ref[0, 0]


def _round_up(x, m):
    return ((x + m - 1) // m) * m


def _pick_tile_e(E, max_tile=4096):
    # Lane-dense tiles (multiple of 128). Aim for >= 2 tiles (v7x dual-TC)
    # while capping the tile so double-buffered blocks stay well under the
    # v5e 16 MiB scoped-VMEM default.
    if E <= 128:
        return 128
    tile = int(pl.next_power_of_2(pl.cdiv(E, 2)))
    return max(128, min(tile, max_tile))


def edge_decoder_forward(z_user, z_movie, edge_label_index, w1, b1, w2, b2,
                         *, tile_e=None):
    """EdgeDecoder forward (eval mode). Returns a 1-D array of shape (E,)."""
    H = z_user.shape[-1]
    U = z_user.shape[0]
    M = z_movie.shape[0]
    row = edge_label_index[0].astype(jnp.int32)
    col = edge_label_index[1].astype(jnp.int32)
    E = row.shape[0]
    if E == 0:  # empty edge set -> empty scores (avoid a zero-size grid)
        return jnp.zeros((0,), jnp.float32)

    if tile_e is None:
        tile_e = _pick_tile_e(E)
    n_tiles = pl.cdiv(E, tile_e)
    e_pad = n_tiles * tile_e

    # lin1 applied to the concat == per-node projections, computed once here
    # (f32), then cast to bf16 for the VMEM-resident tables.
    pu_t = (z_user.astype(jnp.float32) @ w1[:H]).T.astype(jnp.bfloat16)   # (2H,U)
    pm_t = (z_movie.astype(jnp.float32) @ w1[H:]).T.astype(jnp.bfloat16)  # (2H,M)
    u_pad = _round_up(U, 16)
    m_pad = _round_up(M, 16)
    pu_t = jnp.pad(pu_t, ((0, 0), (0, u_pad - U)))
    pm_t = jnp.pad(pm_t, ((0, 0), (0, m_pad - M)))

    # Edge indices as lane-dense (1, e_pad) rows; padded tail indexes node 0
    # and is sliced off after the kernel.
    row_p = jnp.pad(row, (0, e_pad - E)).reshape(1, e_pad)
    col_p = jnp.pad(col, (0, e_pad - E)).reshape(1, e_pad)

    b1_col = b1.reshape(-1, 1).astype(jnp.float32)   # (2H, 1)
    w2_col = w2.reshape(-1, 1).astype(jnp.float32)   # (2H, 1)
    b2_s = b2.reshape(1, 1).astype(jnp.float32)      # (1, 1) -> SMEM scalar

    const = lambda i: (0, 0)   # constant block index -> stays VMEM-resident
    grid_spec = pltpu.PrefetchScalarGridSpec(
        num_scalar_prefetch=0,
        grid=(n_tiles,),
        in_specs=[
            pl.BlockSpec((1, tile_e), lambda i: (0, i)),        # row ids
            pl.BlockSpec((1, tile_e), lambda i: (0, i)),        # col ids
            pl.BlockSpec((2 * H, u_pad), const),                # PU^T table
            pl.BlockSpec((2 * H, m_pad), const),                # PM^T table
            pl.BlockSpec((2 * H, 1), const),                    # b1 column
            pl.BlockSpec((2 * H, 1), const),                    # w2 column
            pl.BlockSpec(memory_space=pltpu.MemorySpace.SMEM),  # b2 scalar
        ],
        out_specs=pl.BlockSpec((1, tile_e), lambda i: (0, i)),  # lane-dense row
    )

    cost = pl.CostEstimate(
        flops=2 * e_pad * 2 * H * (u_pad + m_pad) + 6 * e_pad * 2 * H,
        transcendentals=0,
        bytes_accessed=e_pad * (4 + 4 + 4)                 # row, col, out
                       + 2 * H * (u_pad + m_pad) * 2       # bf16 tables
                       + 2 * (2 * H) * 4 + 4,              # b1, w2, b2
    )

    out = pl.pallas_call(
        edge_decoder_kernel,
        out_shape=jax.ShapeDtypeStruct((1, e_pad), jnp.float32),
        grid_spec=grid_spec,
        compiler_params=pltpu.CompilerParams(
            # Edge tiles are independent -> shard across TensorCores (v7x).
            dimension_semantics=("parallel",),
        ),
        cost_estimate=cost,
    )(row_p, col_p, pu_t, pm_t, b1_col, w2_col, b2_s)

    return out.reshape(-1)[:E]  # drop padded tail == .view(-1)


if __name__ == "__main__":
    H = 16                 # hidden_channels
    NUM_USERS = 64
    NUM_MOVIES = 80
    E = 1000               # number of edges to score (not a tile multiple)

    key = jax.random.PRNGKey(0)
    k_zu, k_zm, k_row, k_col, k_w1, k_b1, k_w2, k_b2 = jax.random.split(key, 8)

    # node embeddings (z_dict)
    z_user = jax.random.normal(k_zu, (NUM_USERS, H), dtype=jnp.float32)
    z_movie = jax.random.normal(k_zm, (NUM_MOVIES, H), dtype=jnp.float32)

    # edge_label_index: (2, E) int32
    row = jax.random.randint(k_row, (E,), 0, NUM_USERS, dtype=jnp.int32)
    col = jax.random.randint(k_col, (E,), 0, NUM_MOVIES, dtype=jnp.int32)
    edge_label_index = jnp.stack([row, col], axis=0)

    # Deterministic parameter init for Linear(2H, 2H) and Linear(2H, 1);
    # stored pre-transposed as (in, out) for y = x @ W + b.
    in1 = 2 * H
    bound1 = 1.0 / (in1 ** 0.5)
    w1 = jax.random.uniform(k_w1, (in1, in1), jnp.float32, -bound1, bound1)
    b1 = jax.random.uniform(k_b1, (in1,), jnp.float32, -bound1, bound1)
    w2 = jax.random.uniform(k_w2, (in1, 1), jnp.float32, -bound1, bound1)
    b2 = jax.random.uniform(k_b2, (1,), jnp.float32, -bound1, bound1)

    fwd = jax.jit(edge_decoder_forward)
    out = fwd(z_user, z_movie, edge_label_index, w1, b1, w2, b2)
    out = jax.block_until_ready(out)
    assert out.shape == (E,)

    # Reference 1: kernel semantics (bf16 projected tables, f32 elsewhere).
    pu_bf = (z_user @ w1[:H]).astype(jnp.bfloat16).astype(jnp.float32)
    pm_bf = (z_movie @ w1[H:]).astype(jnp.bfloat16).astype(jnp.float32)
    h_r = jnp.maximum(pu_bf[row] + pm_bf[col] + b1, 0.0)
    ref_bf = (h_r @ w2 + b2).reshape(-1)
    assert jnp.allclose(out, ref_bf, atol=1e-4, rtol=1e-4), float(
        jnp.max(jnp.abs(out - ref_bf)))

    # Reference 2: full f32 PyTorch-equivalent math (loose: bf16 tables).
    z_cat = jnp.concatenate([z_user[row], z_movie[col]], axis=-1)
    ref_f32 = (jnp.maximum(z_cat @ w1 + b1, 0.0) @ w2 + b2).reshape(-1)
    assert jnp.allclose(out, ref_f32, atol=2e-2, rtol=2e-2), float(
        jnp.max(jnp.abs(out - ref_f32)))

    print("KERNEL_OK")
</pallas_src>

<mosaic_0001>
module attributes {stable_mosaic.version = 11 : i64} {
  func.func @edge_decoder_kernel(%arg0: i32, %arg1: memref<1x512xi32, #tpu.memory_space<vmem>>, %arg2: memref<1x512xi32, #tpu.memory_space<vmem>>, %arg3: memref<32x64xbf16, #tpu.memory_space<vmem>>, %arg4: memref<32x80xbf16, #tpu.memory_space<vmem>>, %arg5: memref<32x1xf32, #tpu.memory_space<vmem>>, %arg6: memref<32x1xf32, #tpu.memory_space<vmem>>, %arg7: memref<1x1xf32, #tpu.memory_space<smem>>, %arg8: memref<1x512xf32, #tpu.memory_space<vmem>>) attributes {dimension_semantics = [#tpu.dimension_semantics<parallel>], iteration_bounds = array<i64: 2>, scalar_prefetch = 0 : i64, scratch_operands = 0 : i64, tpu.core_type = #tpu.core_type<tc>, window_params = [{transform_indices = @transform_0, window_bounds = array<i64: 1, 512>}, {transform_indices = @transform_1, window_bounds = array<i64: 1, 512>}, {pipeline_mode = #tpu.pipeline_mode<synchronous>, transform_indices = @transform_2, window_bounds = array<i64: 32, 64>}, {pipeline_mode = #tpu.pipeline_mode<synchronous>, transform_indices = @transform_3, window_bounds = array<i64: 32, 80>}, {pipeline_mode = #tpu.pipeline_mode<synchronous>, transform_indices = @transform_4, window_bounds = array<i64: 32, 1>}, {pipeline_mode = #tpu.pipeline_mode<synchronous>, transform_indices = @transform_5, window_bounds = array<i64: 32, 1>}, {transform_indices = @transform_6, window_bounds = array<i64: 1, 1>}, {transform_indices = @transform_7, window_bounds = array<i64: 1, 512>}]} {
    %0 = tpu.iota {dimensions = array<i32: 0>} : vector<64x512xi32>
    %c0 = arith.constant 0 : index
    %c0_0 = arith.constant 0 : index
    %1 = vector.load %arg1[%c0, %c0_0] : memref<1x512xi32, #tpu.memory_space<vmem>>, vector<1x512xi32>
    %2 = vector.broadcast %1 : vector<1x512xi32> to vector<64x512xi32>
    %3 = arith.cmpi eq, %0, %2 : vector<64x512xi32>
    %cst = arith.constant 1.000000e+00 : f32
    %cst_1 = arith.constant 0.000000e+00 : f32
    %4 = vector.broadcast %cst : f32 to vector<64x512xf32>
    %5 = vector.broadcast %cst_1 : f32 to vector<64x512xf32>
    %6 = arith.select %3, %4, %5 : vector<64x512xi1>, vector<64x512xf32>
    %7 = arith.truncf %6 : vector<64x512xf32> to vector<64x512xbf16>
    %8 = tpu.iota {dimensions = array<i32: 0>} : vector<80x512xi32>
    %c0_2 = arith.constant 0 : index
    %c0_3 = arith.constant 0 : index
    %9 = vector.load %arg2[%c0_2, %c0_3] : memref<1x512xi32, #tpu.memory_space<vmem>>, vector<1x512xi32>
    %10 = vector.broadcast %9 : vector<1x512xi32> to vector<80x512xi32>
    %11 = arith.cmpi eq, %8, %10 : vector<80x512xi32>
    %cst_4 = arith.constant 1.000000e+00 : f32
    %cst_5 = arith.constant 0.000000e+00 : f32
    %12 = vector.broadcast %cst_4 : f32 to vector<80x512xf32>
    %13 = vector.broadcast %cst_5 : f32 to vector<80x512xf32>
    %14 = arith.select %11, %12, %13 : vector<80x512xi1>, vector<80x512xf32>
    %15 = arith.truncf %14 : vector<80x512xf32> to vector<80x512xbf16>
    %c0_6 = arith.constant 0 : index
    %c0_7 = arith.constant 0 : index
    %16 = vector.load %arg3[%c0_6, %c0_7] : memref<32x64xbf16, #tpu.memory_space<vmem>>, vector<32x64xbf16>
    %cst_8 = arith.constant dense<0.000000e+00> : vector<32x512xf32>
    %17 = tpu.matmul %16, %7, %cst_8 {dimension_numbers = #tpu.dot_dimension_numbers<[1], [0], [0], [1], [0, 0, 1, 1], [], []>} : vector<32x64xbf16>, vector<64x512xbf16>, vector<32x512xf32> -> vector<32x512xf32>
    %c0_9 = arith.constant 0 : index
    %c0_10 = arith.constant 0 : index
    %18 = vector.load %arg4[%c0_9, %c0_10] : memref<32x80xbf16, #tpu.memory_space<vmem>>, vector<32x80xbf16>
    %cst_11 = arith.constant dense<0.000000e+00> : vector<32x512xf32>
    %19 = tpu.matmul %18, %15, %cst_11 {dimension_numbers = #tpu.dot_dimension_numbers<[1], [0], [0], [1], [0, 0, 1, 1], [], []>} : vector<32x80xbf16>, vector<80x512xbf16>, vector<32x512xf32> -> vector<32x512xf32>
    %20 = arith.addf %17, %19 : vector<32x512xf32>
    %c0_12 = arith.constant 0 : index
    %c0_13 = arith.constant 0 : index
    %21 = vector.load %arg5[%c0_12, %c0_13] : memref<32x1xf32, #tpu.memory_space<vmem>>, vector<32x1xf32>
    %22 = vector.broadcast %21 : vector<32x1xf32> to vector<32x512xf32>
    %23 = arith.addf %20, %22 : vector<32x512xf32>
    %cst_14 = arith.constant 0.000000e+00 : f32
    %24 = vector.broadcast %cst_14 : f32 to vector<32x512xf32>
    %25 = arith.maximumf %23, %24 : vector<32x512xf32>
    %c0_15 = arith.constant 0 : index
    %c0_16 = arith.constant 0 : index
    %26 = vector.load %arg6[%c0_15, %c0_16] : memref<32x1xf32, #tpu.memory_space<vmem>>, vector<32x1xf32>
    %27 = vector.broadcast %26 : vector<32x1xf32> to vector<32x512xf32>
    %28 = arith.mulf %25, %27 : vector<32x512xf32>
    %cst_17 = arith.constant dense<0.000000e+00> : vector<512xf32>
    %29 = vector.multi_reduction <add>, %28, %cst_17 [0] : vector<32x512xf32> to vector<512xf32>
    %30 = vector.shape_cast %29 : vector<512xf32> to vector<1x512xf32>
    %c0_18 = arith.constant 0 : index
    %c0_19 = arith.constant 0 : index
    %31 = memref.load %arg7[%c0_18, %c0_19] : memref<1x1xf32, #tpu.memory_space<smem>>
    %32 = vector.broadcast %31 : f32 to vector<1x512xf32>
    %33 = arith.addf %30, %32 : vector<1x512xf32>
    %c0_20 = arith.constant 0 : index
    %c0_21 = arith.constant 0 : index
    %34 = vector.load %arg8[%c0_20, %c0_21] : memref<1x512xf32, #tpu.memory_space<vmem>>, vector<1x512xf32>
    tpu.vector_store %arg8[%c0_20, %c0_21], %33 {strides = array<i32>} : memref<1x512xf32, #tpu.memory_space<vmem>>, vector<1x512xf32>,
    return
  }
  func.func @transform_0(%arg0: i32) -> (i32, i32) {
    %c0_i32 = arith.constant 0 : i32
    %c0_i32_0 = arith.constant 0 : i32
    return %c0_i32, %arg0 : i32, i32
  }
  func.func @transform_1(%arg0: i32) -> (i32, i32) {
    %c0_i32 = arith.constant 0 : i32
    %c0_i32_0 = arith.constant 0 : i32
    return %c0_i32, %arg0 : i32, i32
  }
  func.func @transform_2(%arg0: i32) -> (i32, i32) {
    %c0_i32 = arith.constant 0 : i32
    %c0_i32_0 = arith.constant 0 : i32
    %c0_i32_1 = arith.constant 0 : i32
    return %c0_i32, %c0_i32_0 : i32, i32
  }
  func.func @transform_3(%arg0: i32) -> (i32, i32) {
    %c0_i32 = arith.constant 0 : i32
    %c0_i32_0 = arith.constant 0 : i32
    %c0_i32_1 = arith.constant 0 : i32
    return %c0_i32, %c0_i32_0 : i32, i32
  }
  func.func @transform_4(%arg0: i32) -> (i32, i32) {
    %c0_i32 = arith.constant 0 : i32
    %c0_i32_0 = arith.constant 0 : i32
    %c0_i32_1 = arith.constant 0 : i32
    return %c0_i32, %c0_i32_0 : i32, i32
  }
  func.func @transform_5(%arg0: i32) -> (i32, i32) {
    %c0_i32 = arith.constant 0 : i32
    %c0_i32_0 = arith.constant 0 : i32
    %c0_i32_1 = arith.constant 0 : i32
    return %c0_i32, %c0_i32_0 : i32, i32
  }
  func.func @transform_6(%arg0: i32) -> (i32, i32) {
    %c0_i32 = arith.constant 0 : i32
    %c0_i32_0 = arith.constant 0 : i32
    %c0_i32_1 = arith.constant 0 : i32
    return %c0_i32, %c0_i32_0 : i32, i32
  }
  func.func @transform_7(%arg0: i32) -> (i32, i32) {
    %c0_i32 = arith.constant 0 : i32
    %c0_i32_0 = arith.constant 0 : i32
    return %c0_i32, %arg0 : i32, i32
  }
}

</mosaic_0001>

<llo_original>
// kernel: edge_decoder_forward.1
$region0: #{edge_decoder_forward.1}
  #allocation0 [shape = 'u32[]', space=smem, size = 0x4, offset = 0x4, fixed_abs, tag = 'smem constant byte address 0x4 - core index']
  #allocation1 [shape = 'u32[144,128]{1,0:T(1,128)}', space=vmem, size = 0x12000, scoped, tag = 'internal scratch']
  #allocation2 [shape = 'f32[1,1]{1,0:T(1,128)S(6)}', space=smem, size = 0x200, scoped, tag = 'scoped memory for edge_decoder_forward.1']
  %s0 = inlined_call_operand.vmem [shape: s32[1,1024], index: 0, kind: input, shape index: {}]
  %s1 = inlined_call_operand.vmem [shape: s32[1,1024], index: 1, kind: input, shape index: {}]
  %s2 = inlined_call_operand.vmem [shape: bf16[32,64], index: 2, kind: input, shape index: {}]
  %s3 = inlined_call_operand.vmem [shape: bf16[32,80], index: 3, kind: input, shape index: {}]
  %s4 = inlined_call_operand.vmem [shape: f32[32,1], index: 4, kind: input, shape index: {}]
  %s5 = inlined_call_operand.vmem [shape: f32[32,1], index: 5, kind: input, shape index: {}]
  %s6 = inlined_call_operand.<no memory space> [shape: f32[1,1], index: 6, kind: input, shape index: {}]
  %s7 = inlined_call_operand.hbm [shape: f32[1,1024], index: 7, kind: output, shape index: {}]
  %s8 = sld [smem:[#allocation0]]
  $region61: #{edge_decoder_forward.1} parent=0
    _
  %s10 = ssub.s32 1, %s8
  %s11 = scalar_select 0, %s10, %s8
  %12 = sst [smem:[#allocation2]] %s6
  $region1: #{edge_decoder_forward.1} parent=0
    #allocation3 [shape = 'u8[4096]{0}', space=vmem, size = 0x1000, scoped, tag = 'output window, operand 0']
    #allocation4 [shape = 's32[2]{0}', space=sflag, size = 0x8, scoped, tag = 'scoped memory for edge_decoder_forward.1']
    %13 = vsyncpa [#allocation4], 0
    %s14 = scalar_lea.sflag [#allocation4], 1
    %15 = vsyncpa %s14, 0
    loop: start=0, step=1, limit=4
    $region2: #{edge_decoder_forward.1} parent=1 // loop_pre_header
      _
    $region3: #{edge_decoder_forward.1} parent=1 // loop_header
      %s17 = sphi 0, %s21
      %p18 = scmp.ge.s32.totalorder %s17, 4
      %s27 = sphi 0, %s29
      %s30 = sphi 0, %s27
      %s31 = sphi 0, %s30
      %s47 = sphi 0, %s31
      %s53 = sphi 0, %s55
      %s56 = sphi 0, %s53
      %s57 = sphi 0, %s56
      %s73 = sphi 0, %s57
      %s77 = sphi 0, %s77
      %s79 = sphi 0, %s77
      %s80 = sphi 0, %s79
      %s94 = sphi 0, %s80
      %s98 = sphi 0, %s98
      %s100 = sphi 0, %s98
      %s101 = sphi 0, %s100
      %s115 = sphi 0, %s101
      %s119 = sphi 0, %s119
      %s121 = sphi 0, %s119
      %s122 = sphi 0, %s121
      %s136 = sphi 0, %s122
      %s140 = sphi 0, %s140
      %s142 = sphi 0, %s140
      %s143 = sphi 0, %s142
      %s157 = sphi 0, %s143
      %s161 = sphi 0, %s161
      %s163 = sphi 0, %s161
      %s164 = sphi 0, %s163
      %s178 = sphi 0, %s164
      %s184 = sphi 0, %s186
      %s187 = sphi 0, %s184
      %s188 = sphi 0, %s187
      %s204 = sphi 0, %s188
    $region4: #{edge_decoder_forward.1} parent=1 // loop_header_branch
      %20 = sbr.rel (%p18) target = $region8
    $region5: #{edge_decoder_forward.1} parent=1 // loop_body
      %s22 = ssub.s32 %s17, 1
      %s23 = ssub.s32 %s17, 2
      %s24 = sadd.s32 %s17, 1
      %s25 = ssub.s32 %s17, %s24
      %p26 = scmp.eq.s32.totalorder %s25, 0
      %s28 = sadd.s32 %s27, 1
      %s29 = scalar_select %p26, %s27, %s28
      %p32 = pneg %p26
      %p33 = scmp.eq.s32.totalorder %s17, 1
      %p34 = por %p32, %p33
      %p35 = scmp.ne.s32.totalorder %s27, %s30
      %p36 = scmp.eq.s32.totalorder %s17, 0
      %p37 = por %p35, %p36
      %p38 = scmp.ne.s32.totalorder %s27, %s30
      %p39 = scmp.eq.s32.totalorder %s22, 1
      %p40 = por %p38, %p39
      %p41 = scmp.ne.s32.totalorder %s30, %s31
      %p42 = scmp.eq.s32.totalorder %s22, 0
      %p43 = por %p41, %p42
      %p44 = scmp.ne.s32.totalorder %s30, %s31
      %p45 = scmp.eq.s32.totalorder %s23, 1
      %p46 = por %p44, %p45
      %p48 = scmp.ne.s32.totalorder %s31, %s47
      %p49 = scmp.eq.s32.totalorder %s23, 0
      %p50 = por %p48, %p49
      %s51 = ssub.s32 %s17, %s24
      %p52 = scmp.eq.s32.totalorder %s51, 0
      %s54 = sadd.s32 %s53, 1
      %s55 = scalar_select %p52, %s53, %s54
      %p58 = pneg %p52
      %p59 = scmp.eq.s32.totalorder %s17, 1
      %p60 = por %p58, %p59
      %p61 = scmp.ne.s32.totalorder %s53, %s56
      %p62 = scmp.eq.s32.totalorder %s17, 0
      %p63 = por %p61, %p62
      %p64 = scmp.ne.s32.totalorder %s53, %s56
      %p65 = scmp.eq.s32.totalorder %s22, 1
      %p66 = por %p64, %p65
      %p67 = scmp.ne.s32.totalorder %s56, %s57
      %p68 = scmp.eq.s32.totalorder %s22, 0
      %p69 = por %p67, %p68
      %p70 = scmp.ne.s32.totalorder %s56, %s57
      %p71 = scmp.eq.s32.totalorder %s23, 1
      %p72 = por %p70, %p71
      %p74 = scmp.ne.s32.totalorder %s57, %s73
      %p75 = scmp.eq.s32.totalorder %s23, 0
      %p76 = por %p74, %p75
      %s78 = sadd.s32 %s77, 1
      %p81 = scmp.eq.s32.totalorder %s17, 1
      %p82 = scmp.ne.s32.totalorder %s77, %s79
      %p83 = scmp.eq.s32.totalorder %s17, 0
      %p84 = por %p82, %p83
      %p85 = scmp.ne.s32.totalorder %s77, %s79
      %p86 = scmp.eq.s32.totalorder %s22, 1
      %p87 = por %p85, %p86
      %p88 = scmp.ne.s32.totalorder %s79, %s80
      %p89 = scmp.eq.s32.totalorder %s22, 0
      %p90 = por %p88, %p89
      %p91 = scmp.ne.s32.totalorder %s79, %s80
      %p92 = scmp.eq.s32.totalorder %s23, 1
      %p93 = por %p91, %p92
      %p95 = scmp.ne.s32.totalorder %s80, %s94
      %p96 = scmp.eq.s32.totalorder %s23, 0
      %p97 = por %p95, %p96
      %s99 = sadd.s32 %s98, 1
      %p102 = scmp.eq.s32.totalorder %s17, 1
      %p103 = scmp.ne.s32.totalorder %s98, %s100
      %p104 = scmp.eq.s32.totalorder %s17, 0
      %p105 = por %p103, %p104
      %p106 = scmp.ne.s32.totalorder %s98, %s100
      %p107 = scmp.eq.s32.totalorder %s22, 1
      %p108 = por %p106, %p107
      %p109 = scmp.ne.s32.totalorder %s100, %s101
      %p110 = scmp.eq.s32.totalorder %s22, 0
      %p111 = por %p109, %p110
      %p112 = scmp.ne.s32.totalorder %s100, %s101
      %p113 = scmp.eq.s32.totalorder %s23, 1
      %p114 = por %p112, %p113
      %p116 = scmp.ne.s32.totalorder %s101, %s115
      %p117 = scmp.eq.s32.totalorder %s23, 0
      %p118 = por %p116, %p117
      %s120 = sadd.s32 %s119, 1
      %p123 = scmp.eq.s32.totalorder %s17, 1
      %p124 = scmp.ne.s32.totalorder %s119, %s121
      %p125 = scmp.eq.s32.totalorder %s17, 0
      %p126 = por %p124, %p125
      %p127 = scmp.ne.s32.totalorder %s119, %s121
      %p128 = scmp.eq.s32.totalorder %s22, 1
      %p129 = por %p127, %p128
      %p130 = scmp.ne.s32.totalorder %s121, %s122
      %p131 = scmp.eq.s32.totalorder %s22, 0
      %p132 = por %p130, %p131
      %p133 = scmp.ne.s32.totalorder %s121, %s122
      %p134 = scmp.eq.s32.totalorder %s23, 1
      %p135 = por %p133, %p134
      %p137 = scmp.ne.s32.totalorder %s122, %s136
      %p138 = scmp.eq.s32.totalorder %s23, 0
      %p139 = por %p137, %p138
      %s141 = sadd.s32 %s140, 1
      %p144 = scmp.eq.s32.totalorder %s17, 1
      %p145 = scmp.ne.s32.totalorder %s140, %s142
      %p146 = scmp.eq.s32.totalorder %s17, 0
      %p147 = por %p145, %p146
      %p148 = scmp.ne.s32.totalorder %s140, %s142
      %p149 = scmp.eq.s32.totalorder %s22, 1
      %p150 = por %p148, %p149
      %p151 = scmp.ne.s32.totalorder %s142, %s143
      %p152 = scmp.eq.s32.totalorder %s22, 0
      %p153 = por %p151, %p152
      %p154 = scmp.ne.s32.totalorder %s142, %s143
      %p155 = scmp.eq.s32.totalorder %s23, 1
      %p156 = por %p154, %p155
      %p158 = scmp.ne.s32.totalorder %s143, %s157
      %p159 = scmp.eq.s32.totalorder %s23, 0
      %p160 = por %p158, %p159
      %s162 = sadd.s32 %s161, 1
      %p165 = scmp.eq.s32.totalorder %s17, 1
      %p166 = scmp.ne.s32.totalorder %s161, %s163
      %p167 = scmp.eq.s32.totalorder %s17, 0
      %p168 = por %p166, %p167
      %p169 = scmp.ne.s32.totalorder %s161, %s163
      %p170 = scmp.eq.s32.totalorder %s22, 1
      %p171 = por %p169, %p170
      %p172 = scmp.ne.s32.totalorder %s163, %s164
      %p173 = scmp.eq.s32.totalorder %s22, 0
      %p174 = por %p172, %p173
      %p175 = scmp.ne.s32.totalorder %s163, %s164
      %p176 = scmp.eq.s32.totalorder %s23, 1
      %p177 = por %p175, %p176
      %p179 = scmp.ne.s32.totalorder %s164, %s178
      %p180 = scmp.eq.s32.totalorder %s23, 0
      %p181 = por %p179, %p180
      %s182 = ssub.s32 %s17, %s24
      %p183 = scmp.eq.s32.totalorder %s182, 0
      %s185 = sadd.s32 %s184, 1
      %s186 = scalar_select %p183, %s184, %s185
      %p189 = pneg %p183
      %p190 = scmp.eq.s32.totalorder %s17, 1
      %p191 = por %p189, %p190
      %p192 = scmp.ne.s32.totalorder %s184, %s187
      %p193 = scmp.eq.s32.totalorder %s17, 0
      %p194 = por %p192, %p193
      %p195 = scmp.ne.s32.totalorder %s184, %s187
      %p196 = scmp.eq.s32.totalorder %s22, 1
      %p197 = por %p195, %p196
      %p198 = scmp.ne.s32.totalorder %s187, %s188
      %p199 = scmp.eq.s32.totalorder %s22, 0
      %p200 = por %p198, %p199
      %p201 = scmp.ne.s32.totalorder %s187, %s188
      %p202 = scmp.eq.s32.totalorder %s23, 1
      %p203 = por %p201, %p202
      %p205 = scmp.ne.s32.totalorder %s188, %s204
      %p206 = scmp.eq.s32.totalorder %s23, 0
      %p207 = por %p205, %p206
      %p208 = scmp.le.s32.totalorder 1, %s17
      %p209 = scmp.lt.s32.totalorder %s17, 3
      %p210 = pnand %p208, %p209
      %p211 = pneg %p210
      // Predicated region
      $region9: #{edge_decoder_forward.1} parent=5 // pred_check
        _
      $region10: #{edge_decoder_forward.1} parent=5 // pred_check_branch
        %213 = sbr.rel (%p210) target = $region12
      $region11: #{edge_decoder_forward.1} parent=5 // pred_region
        %s214 = ssub.s32 %s17, 1
        // Predicated region
        $region13: #{edge_decoder_forward.1} parent=11 // pred_check
          %p215 = pneg %p90
        $region14: #{edge_decoder_forward.1} parent=11 // pred_check_branch
          %217 = sbr.rel (%p215) target = $region16
        $region15: #{edge_decoder_forward.1} parent=11 // pred_region
          _
        $region16: #{edge_decoder_forward.1} parent=11 // pred_fallthru
          _
        // Predicated region
        $region17: #{edge_decoder_forward.1} parent=11 // pred_check
          %p218 = pneg %p111
        $region18: #{edge_decoder_forward.1} parent=11 // pred_check_branch
          %220 = sbr.rel (%p218) target = $region20
        $region19: #{edge_decoder_forward.1} parent=11 // pred_region
          _
        $region20: #{edge_decoder_forward.1} parent=11 // pred_fallthru
          _
        // Predicated region
        $region21: #{edge_decoder_forward.1} parent=11 // pred_check
          %p221 = pneg %p132
        $region22: #{edge_decoder_forward.1} parent=11 // pred_check_branch
          %223 = sbr.rel (%p221) target = $region24
        $region23: #{edge_decoder_forward.1} parent=11 // pred_region
          _
        $region24: #{edge_decoder_forward.1} parent=11 // pred_fallthru
          _
        // Predicated region
        $region25: #{edge_decoder_forward.1} parent=11 // pred_check
          %p224 = pneg %p153
        $region26: #{edge_decoder_forward.1} parent=11 // pred_check_branch
          %226 = sbr.rel (%p224) target = $region28
        $region27: #{edge_decoder_forward.1} parent=11 // pred_region
          _
        $region28: #{edge_decoder_forward.1} parent=11 // pred_fallthru
          _
        // Predicated region
        $region29: #{edge_decoder_forward.1} parent=11 // pred_check
          %p227 = pneg %p174
        $region30: #{edge_decoder_forward.1} parent=11 // pred_check_branch
          %229 = sbr.rel (%p227) target = $region32
        $region31: #{edge_decoder_forward.1} parent=11 // pred_region
          _
        $region32: #{edge_decoder_forward.1} parent=11 // pred_fallthru
          _
      $region12: #{edge_decoder_forward.1} parent=5 // pred_fallthru
        _
      %p230 = scmp.lt.s32.totalorder %s17, 2
      // Predicated region
      $region33: #{edge_decoder_forward.1} parent=5 // pred_check
        %p231 = pneg %p230
      $region34: #{edge_decoder_forward.1} parent=5 // pred_check_branch
        %233 = sbr.rel (%p231) target = $region36
      $region35: #{edge_decoder_forward.1} parent=5 // pred_region
        // Predicated region
        $region37: #{edge_decoder_forward.1} parent=35 // pred_check
          %p234 = pneg %p37
        $region38: #{edge_decoder_forward.1} parent=35 // pred_check_branch
          %236 = sbr.rel (%p234) target = $region40
        $region39: #{edge_decoder_forward.1} parent=35 // pred_region
          %s237 = smul.u32 4, %s17
          %p238 = scmp.lt.s32.totalorder %s237, 7
          %s239 = scalar_select %p238, %s237, 7
          %s240 = scalar_lea.vmem %s0, %s239
          %s241 = smul.u32 4, %s17
        $region40: #{edge_decoder_forward.1} parent=35 // pred_fallthru
          _
        // Predicated region
        $region41: #{edge_decoder_forward.1} parent=35 // pred_check
          %p242 = pneg %p63
        $region42: #{edge_decoder_forward.1} parent=35 // pred_check_branch
          %244 = sbr.rel (%p242) target = $region44
        $region43: #{edge_decoder_forward.1} parent=35 // pred_region
          %s245 = smul.u32 4, %s17
          %p246 = scmp.lt.s32.totalorder %s245, 7
          %s247 = scalar_select %p246, %s245, 7
          %s248 = scalar_lea.vmem %s1, %s247
          %s249 = smul.u32 4, %s17
        $region44: #{edge_decoder_forward.1} parent=35 // pred_fallthru
          _
      $region36: #{edge_decoder_forward.1} parent=5 // pred_fallthru
        _
      %p250 = scmp.le.s32.totalorder 1, %s17
      %p251 = scmp.lt.s32.totalorder %s17, 3
      %p252 = pnand %p250, %p251
      %p253 = pneg %p252
      // Predicated region
      $region45: #{edge_decoder_forward.1} parent=5 // pred_check
        _
      $region46: #{edge_decoder_forward.1} parent=5 // pred_check_branch
        %255 = sbr.rel (%p252) target = $region48
      $region47: #{edge_decoder_forward.1} parent=5 // pred_region
        %s256 = ssub.s32 %s17, 1
        %s257 = smul.u32 4, %s22
        %p258 = scmp.lt.s32.totalorder %s257, 7
        %s259 = scalar_select %p258, %s257, 7
        %s260 = scalar_lea.vmem %s0, %s259
        %p261 = pneg %p43
        %p262 = pneg %p40
        %s263 = smul.u32 4, %s22
        %p264 = scmp.lt.s32.totalorder %s263, 7
        %s265 = scalar_select %p264, %s263, 7
        %s266 = scalar_lea.vmem %s1, %s265
        %p267 = pneg %p69
        %p268 = pneg %p66
        %p269 = pneg %p90
        %p270 = pneg %p87
        %p271 = pneg %p111
        %p272 = pneg %p108
        %p273 = pneg %p132
        %p274 = pneg %p129
        %p275 = pneg %p153
        %p276 = pneg %p150
        %p277 = pneg %p174
        %p278 = pneg %p171
        %p279 = pneg %p200
        %p280 = pneg %p197
        %s281 = sand.u32 %s187, 1
        %s282 = scalar_lea.sflag [#allocation4], %s281
        %s283 = sand.u32 %s187, 1
        %s284 = smul.addr %s283, 4
        %s285 = scalar_lea.vmem [#allocation3], %s284
        %s286 = smul.u32 4, %s22
        %p287 = scmp.lt.s32.totalorder %s286, 7
        %s288 = scalar_select %p287, %s286, 7
        %s289 = scalar_lea.vmem %s0, %s288
        %s290 = smul.u32 4, %s22
        %s291 = smul.u32 4, %s22
        %p292 = scmp.lt.s32.totalorder %s291, 7
        %s293 = scalar_select %p292, %s291, 7
        %s294 = scalar_lea.vmem %s1, %s293
        %s295 = smul.u32 4, %s22
        %s296 = smul.u32 4, %s22
        %v298 = vlaneseq
        %v299 = vshrl.u32 %v298, 7
        %v300 = vadd.s32 %v299, 8
        %v301 = vadd.s32 %v299, 16
        %v302 = vadd.s32 %v299, 24
        %v303 = vadd.s32 %v299, 32
        %v304 = vadd.s32 %v299, 40
        %v305 = vadd.s32 %v299, 48
        %v306 = vadd.s32 %v299, 56
        %v307 = vld [vmem:[%s289] sm:$0xf]
        %v308 = vlaneseq
        %v309 = vshrl.u32 %v308, 7
        %v310 = vsub.s32 0, %v309
        %v311 = vrot.slane %v307, %v310
        %v312 = vlaneseq
        %v313 = vshrl.u32 %v312, 7
        %v314 = vsub.s32 1, %v313
        %v315 = vrot.slane %v307, %v314
        %v316 = vlaneseq
        %v317 = vshrl.u32 %v316, 7
        %v318 = vsub.s32 2, %v317
        %v319 = vrot.slane %v307, %v318
        %v320 = vlaneseq
        %v321 = vshrl.u32 %v320, 7
        %v322 = vsub.s32 3, %v321
        %v323 = vrot.slane %v307, %v322
        %vm324 = vcmp.eq.s32.totalorder %v299, %v311
        %vm325 = vcmp.eq.s32.totalorder %v299, %v315
        %vm326 = vcmp.eq.s32.totalorder %v299, %v319
        %vm327 = vcmp.eq.s32.totalorder %v299, %v323
        %vm328 = vcmp.eq.s32.totalorder %v300, %v311
        %vm329 = vcmp.eq.s32.totalorder %v300, %v315
        %vm330 = vcmp.eq.s32.totalorder %v300, %v319
        %vm331 = vcmp.eq.s32.totalorder %v300, %v323
        %vm332 = vcmp.eq.s32.totalorder %v301, %v311
        %vm333 = vcmp.eq.s32.totalorder %v301, %v315
        %vm334 = vcmp.eq.s32.totalorder %v301, %v319
        %vm335 = vcmp.eq.s32.totalorder %v301, %v323
        %vm336 = vcmp.eq.s32.totalorder %v302, %v311
        %vm337 = vcmp.eq.s32.totalorder %v302, %v315
        %vm338 = vcmp.eq.s32.totalorder %v302, %v319
        %vm339 = vcmp.eq.s32.totalorder %v302, %v323
        %vm340 = vcmp.eq.s32.totalorder %v303, %v311
        %vm341 = vcmp.eq.s32.totalorder %v303, %v315
        %vm342 = vcmp.eq.s32.totalorder %v303, %v319
        %vm343 = vcmp.eq.s32.totalorder %v303, %v323
        %vm344 = vcmp.eq.s32.totalorder %v304, %v311
        %vm345 = vcmp.eq.s32.totalorder %v304, %v315
        %vm346 = vcmp.eq.s32.totalorder %v304, %v319
        %vm347 = vcmp.eq.s32.totalorder %v304, %v323
        %vm348 = vcmp.eq.s32.totalorder %v305, %v311
        %vm349 = vcmp.eq.s32.totalorder %v305, %v315
        %vm350 = vcmp.eq.s32.totalorder %v305, %v319
        %vm351 = vcmp.eq.s32.totalorder %v305, %v323
        %vm352 = vcmp.eq.s32.totalorder %v306, %v311
        %vm353 = vcmp.eq.s32.totalorder %v306, %v315
        %vm354 = vcmp.eq.s32.totalorder %v306, %v319
        %vm355 = vcmp.eq.s32.totalorder %v306, %v323
        %v356 = vsel %vm324, 1.0, 0.0
        %v357 = vsel %vm325, 1.0, 0.0
        %v358 = vsel %vm326, 1.0, 0.0
        %v359 = vsel %vm327, 1.0, 0.0
        %v360 = vsel %vm328, 1.0, 0.0
        %v361 = vsel %vm329, 1.0, 0.0
        %v362 = vsel %vm330, 1.0, 0.0
        %v363 = vsel %vm331, 1.0, 0.0
        %v364 = vsel %vm332, 1.0, 0.0
        %v365 = vsel %vm333, 1.0, 0.0
        %v366 = vsel %vm334, 1.0, 0.0
        %v367 = vsel %vm335, 1.0, 0.0
        %v368 = vsel %vm336, 1.0, 0.0
        %v369 = vsel %vm337, 1.0, 0.0
        %v370 = vsel %vm338, 1.0, 0.0
        %v371 = vsel %vm339, 1.0, 0.0
        %v372 = vsel %vm340, 1.0, 0.0
        %v373 = vsel %vm341, 1.0, 0.0
        %v374 = vsel %vm342, 1.0, 0.0
        %v375 = vsel %vm343, 1.0, 0.0
        %v376 = vsel %vm344, 1.0, 0.0
        %v377 = vsel %vm345, 1.0, 0.0
        %v378 = vsel %vm346, 1.0, 0.0
        %v379 = vsel %vm347, 1.0, 0.0
        %v380 = vsel %vm348, 1.0, 0.0
        %v381 = vsel %vm349, 1.0, 0.0
        %v382 = vsel %vm350, 1.0, 0.0
        %v383 = vsel %vm351, 1.0, 0.0
        %v384 = vsel %vm352, 1.0, 0.0
        %v385 = vsel %vm353, 1.0, 0.0
        %v386 = vsel %vm354, 1.0, 0.0
        %v387 = vsel %vm355, 1.0, 0.0
        %v388 = vpack.c.bf16 %v360, %v356
        %v389 = vpack.c.bf16 %v361, %v357
        %v390 = vpack.c.bf16 %v362, %v358
        %v391 = vpack.c.bf16 %v363, %v359
        %v392 = vpack.c.bf16 %v368, %v364
        %v393 = vpack.c.bf16 %v369, %v365
        %v394 = vpack.c.bf16 %v370, %v366
        %v395 = vpack.c.bf16 %v371, %v367
        %v396 = vpack.c.bf16 %v376, %v372
        %v397 = vpack.c.bf16 %v377, %v373
        %v398 = vpack.c.bf16 %v378, %v374
        %v399 = vpack.c.bf16 %v379, %v375
        %v400 = vpack.c.bf16 %v384, %v380
        %v401 = vpack.c.bf16 %v385, %v381
        %v402 = vpack.c.bf16 %v386, %v382
        %v403 = vpack.c.bf16 %v387, %v383
        %v404 = vadd.s32 %v299, 64
        %v405 = vadd.s32 %v299, 72
        %v406 = vld [vmem:[%s294] sm:$0xf]
        %v407 = vlaneseq
        %v408 = vshrl.u32 %v407, 7
        %v409 = vsub.s32 0, %v408
        %v410 = vrot.slane %v406, %v409
        %v411 = vlaneseq
        %v412 = vshrl.u32 %v411, 7
        %v413 = vsub.s32 1, %v412
        %v414 = vrot.slane %v406, %v413
        %v415 = vlaneseq
        %v416 = vshrl.u32 %v415, 7
        %v417 = vsub.s32 2, %v416
        %v418 = vrot.slane %v406, %v417
        %v419 = vlaneseq
        %v420 = vshrl.u32 %v419, 7
        %v421 = vsub.s32 3, %v420
        %v422 = vrot.slane %v406, %v421
        %vm423 = vcmp.eq.s32.totalorder %v299, %v410
        %vm424 = vcmp.eq.s32.totalorder %v299, %v414
        %vm425 = vcmp.eq.s32.totalorder %v299, %v418
        %vm426 = vcmp.eq.s32.totalorder %v299, %v422
        %vm427 = vcmp.eq.s32.totalorder %v300, %v410
        %vm428 = vcmp.eq.s32.totalorder %v300, %v414
        %vm429 = vcmp.eq.s32.totalorder %v300, %v418
        %vm430 = vcmp.eq.s32.totalorder %v300, %v422
        %vm431 = vcmp.eq.s32.totalorder %v301, %v410
        %vm432 = vcmp.eq.s32.totalorder %v301, %v414
        %vm433 = vcmp.eq.s32.totalorder %v301, %v418
        %vm434 = vcmp.eq.s32.totalorder %v301, %v422
        %vm435 = vcmp.eq.s32.totalorder %v302, %v410
        %vm436 = vcmp.eq.s32.totalorder %v302, %v414
        %vm437 = vcmp.eq.s32.totalorder %v302, %v418
        %vm438 = vcmp.eq.s32.totalorder %v302, %v422
        %vm439 = vcmp.eq.s32.totalorder %v303, %v410
        %vm440 = vcmp.eq.s32.totalorder %v303, %v414
        %vm441 = vcmp.eq.s32.totalorder %v303, %v418
        %vm442 = vcmp.eq.s32.totalorder %v303, %v422
        %vm443 = vcmp.eq.s32.totalorder %v304, %v410
        %vm444 = vcmp.eq.s32.totalorder %v304, %v414
        %vm445 = vcmp.eq.s32.totalorder %v304, %v418
        %vm446 = vcmp.eq.s32.totalorder %v304, %v422
        %vm447 = vcmp.eq.s32.totalorder %v305, %v410
        %vm448 = vcmp.eq.s32.totalorder %v305, %v414
        %vm449 = vcmp.eq.s32.totalorder %v305, %v418
        %vm450 = vcmp.eq.s32.totalorder %v305, %v422
        %vm451 = vcmp.eq.s32.totalorder %v306, %v410
        %vm452 = vcmp.eq.s32.totalorder %v306, %v414
        %vm453 = vcmp.eq.s32.totalorder %v306, %v418
        %vm454 = vcmp.eq.s32.totalorder %v306, %v422
        %vm455 = vcmp.eq.s32.totalorder %v404, %v410
        %vm456 = vcmp.eq.s32.totalorder %v404, %v414
        %vm457 = vcmp.eq.s32.totalorder %v404, %v418
        %vm458 = vcmp.eq.s32.totalorder %v404, %v422
        %vm459 = vcmp.eq.s32.totalorder %v405, %v410
        %vm460 = vcmp.eq.s32.totalorder %v405, %v414
        %vm461 = vcmp.eq.s32.totalorder %v405, %v418
        %vm462 = vcmp.eq.s32.totalorder %v405, %v422
        %v463 = vsel %vm423, 1.0, 0.0
        %v464 = vsel %vm424, 1.0, 0.0
        %v465 = vsel %vm425, 1.0, 0.0
        %v466 = vsel %vm426, 1.0, 0.0
        %v467 = vsel %vm427, 1.0, 0.0
        %v468 = vsel %vm428, 1.0, 0.0
        %v469 = vsel %vm429, 1.0, 0.0
        %v470 = vsel %vm430, 1.0, 0.0
        %v471 = vsel %vm431, 1.0, 0.0
        %v472 = vsel %vm432, 1.0, 0.0
        %v473 = vsel %vm433, 1.0, 0.0
        %v474 = vsel %vm434, 1.0, 0.0
        %v475 = vsel %vm435, 1.0, 0.0
        %v476 = vsel %vm436, 1.0, 0.0
        %v477 = vsel %vm437, 1.0, 0.0
        %v478 = vsel %vm438, 1.0, 0.0
        %v479 = vsel %vm439, 1.0, 0.0
        %v480 = vsel %vm440, 1.0, 0.0
        %v481 = vsel %vm441, 1.0, 0.0
        %v482 = vsel %vm442, 1.0, 0.0
        %v483 = vsel %vm443, 1.0, 0.0
        %v484 = vsel %vm444, 1.0, 0.0
        %v485 = vsel %vm445, 1.0, 0.0
        %v486 = vsel %vm446, 1.0, 0.0
        %v487 = vsel %vm447, 1.0, 0.0
        %v488 = vsel %vm448, 1.0, 0.0
        %v489 = vsel %vm449, 1.0, 0.0
        %v490 = vsel %vm450, 1.0, 0.0
        %v491 = vsel %vm451, 1.0, 0.0
        %v492 = vsel %vm452, 1.0, 0.0
        %v493 = vsel %vm453, 1.0, 0.0
        %v494 = vsel %vm454, 1.0, 0.0
        %v495 = vsel %vm455, 1.0, 0.0
        %v496 = vsel %vm456, 1.0, 0.0
        %v497 = vsel %vm457, 1.0, 0.0
        %v498 = vsel %vm458, 1.0, 0.0
        %v499 = vsel %vm459, 1.0, 0.0
        %v500 = vsel %vm460, 1.0, 0.0
        %v501 = vsel %vm461, 1.0, 0.0
        %v502 = vsel %vm462, 1.0, 0.0
        %v503 = vpack.c.bf16 %v467, %v463
        %v504 = vpack.c.bf16 %v468, %v464
        %v505 = vpack.c.bf16 %v469, %v465
        %v506 = vpack.c.bf16 %v470, %v466
        %v507 = vpack.c.bf16 %v475, %v471
        %v508 = vpack.c.bf16 %v476, %v472
        %v509 = vpack.c.bf16 %v477, %v473
        %v510 = vpack.c.bf16 %v478, %v474
        %v511 = vpack.c.bf16 %v483, %v479
        %v512 = vpack.c.bf16 %v484, %v480
        %v513 = vpack.c.bf16 %v485, %v481
        %v514 = vpack.c.bf16 %v486, %v482
        %v515 = vpack.c.bf16 %v491, %v487
        %v516 = vpack.c.bf16 %v492, %v488
        %v517 = vpack.c.bf16 %v493, %v489
        %v518 = vpack.c.bf16 %v494, %v490
        %v519 = vpack.c.bf16 %v499, %v495
        %v520 = vpack.c.bf16 %v500, %v496
        %v521 = vpack.c.bf16 %v501, %v497
        %v522 = vpack.c.bf16 %v502, %v498
        %v523 = vld [vmem:[%s2] sm:$0xf]
        %v524 = vld [vmem:[%s2 + $0x4] sm:$0xf]
        %v525 = vld [vmem:[%s2 + $0x8] sm:$0xf]
        %v526 = vld [vmem:[%s2 + $0xc] sm:$0xf]
        %v527 = vld [vmem:[%s3] sm:$0xf]
        %v528 = vld [vmem:[%s3 + $0x4] sm:$0xf]
        %v529 = vld [vmem:[%s3 + $0x8] sm:$0xf]
        %v530 = vld [vmem:[%s3 + $0xc] sm:$0xf]
        %v535 = vunpack.c.l.b16 %v527
        %v536 = vunpack.c.l.b16 %v528
        %v537 = vunpack.c.l.b16 %v529
        %v538 = vunpack.c.l.b16 %v530
        %v539 = vpack.c.b16 %v536, %v535
        %v540 = vpack.c.b16 %v538, %v537
        %vm541 = vcmask 654336
        %v543 = vsel %vm541, %v539, 0
        %v546 = vsel %vm541, %v540, 0
        %548 = vmatprep.subr.bf16.mxu0 0
        %549 = vmatpush1.bf16.msra.mxu0 0
        %550 = vmatprep.subr.bf16.mxu0 0
        %551 = vmatpush1.bf16.msra.mxu0 0
        %552 = vmatprep.subr.bf16.mxu0 0
        %553 = vmatpush1.bf16.msra.mxu0 0
        %554 = vmatprep.subr.bf16.mxu0 %v520
        %555 = vmatpush1.bf16.msra.mxu0 %v519
        %556 = vmatprep.subr.bf16.mxu0 %v516
        %557 = vmatpush1.bf16.msra.mxu0 %v515
        %558 = vmatprep.subr.bf16.mxu0 %v512
        %559 = vmatpush1.bf16.msra.mxu0 %v511
        %560 = vmatprep.subr.bf16.mxu0 %v508
        %561 = vmatpush1.bf16.msra.mxu0 %v507
        %562 = vmatprep.subr.bf16.mxu0 %v504
        %563 = vmatpush1.bf16.msra.mxu0 %v503
        %564 = vmatprep.subr.bf16.mxu0 0
        %565 = vmatpush2.bf16.msra.mxu0 0
        %566 = vmatprep.subr.bf16.mxu0 0
        %567 = vmatpush2.bf16.msra.mxu0 0
        %568 = vmatprep.subr.bf16.mxu0 0
        %569 = vmatpush2.bf16.msra.mxu0 0
        %570 = vmatprep.subr.bf16.mxu0 0
        %571 = vmatpush2.bf16.msra.mxu0 0
        %572 = vmatprep.subr.bf16.mxu0 0
        %573 = vmatpush2.bf16.msra.mxu0 0
        %574 = vmatprep.subr.bf16.mxu0 0
        %575 = vmatpush2.bf16.msra.mxu0 0
        %576 = vmatprep.subr.bf16.mxu0 0
        %577 = vmatpush2.bf16.msra.mxu0 0
        %578 = vmatprep.subr.bf16.mxu0 0
        %579 = vmatpush2.bf16.msra.mxu0 0
        %580 = vmatprep.mubr.bf16.mxu0 0
        %581 = vmatmul.mubr.bf16.gmra.mxu0 %v543
        %v582 = vpop.f32.mrf.mxu0
        %v583 = vadd.f32 0.0, %v582
        %v584 = vpop.f32.mrf.mxu0
        %v585 = vadd.f32 0.0, %v584
        %v586 = vpop.f32.mrf.mxu0
        %v587 = vadd.f32 0.0, %v586
        %v588 = vpop.f32.mrf.mxu0
        %v589 = vadd.f32 0.0, %v588
        %590 = vmatprep.mubr.bf16.mxu0 0
        %591 = vmatmul.mubr.bf16.gmra.mxu0 %v546
        %v592 = vpop.f32.mrf.mxu0
        %v593 = vadd.f32 0.0, %v592
        %v594 = vpop.f32.mrf.mxu0
        %v595 = vadd.f32 0.0, %v594
        %v596 = vpop.f32.mrf.mxu0
        %v597 = vadd.f32 0.0, %v596
        %v598 = vpop.f32.mrf.mxu0
        %v599 = vadd.f32 0.0, %v598
        %600 = vdwg.mxu0
        %601 = vmatprep.subr.bf16.mxu0 0
        %602 = vmatpush1.bf16.msra.mxu0 0
        %603 = vmatprep.subr.bf16.mxu0 0
        %604 = vmatpush1.bf16.msra.mxu0 0
        %605 = vmatprep.subr.bf16.mxu0 0
        %606 = vmatpush1.bf16.msra.mxu0 0
        %607 = vmatprep.subr.bf16.mxu0 %v522
        %608 = vmatpush1.bf16.msra.mxu0 %v521
        %609 = vmatprep.subr.bf16.mxu0 %v518
        %610 = vmatpush1.bf16.msra.mxu0 %v517
        %611 = vmatprep.subr.bf16.mxu0 %v514
        %612 = vmatpush1.bf16.msra.mxu0 %v513
        %613 = vmatprep.subr.bf16.mxu0 %v510
        %614 = vmatpush1.bf16.msra.mxu0 %v509
        %615 = vmatprep.subr.bf16.mxu0 %v506
        %616 = vmatpush1.bf16.msra.mxu0 %v505
        %617 = vmatprep.subr.bf16.mxu0 0
        %618 = vmatpush2.bf16.msra.mxu0 0
        %619 = vmatprep.subr.bf16.mxu0 0
        %620 = vmatpush2.bf16.msra.mxu0 0
        %621 = vmatprep.subr.bf16.mxu0 0
        %622 = vmatpush2.bf16.msra.mxu0 0
        %623 = vmatprep.subr.bf16.mxu0 0
        %624 = vmatpush2.bf16.msra.mxu0 0
        %625 = vmatprep.subr.bf16.mxu0 0
        %626 = vmatpush2.bf16.msra.mxu0 0
        %627 = vmatprep.subr.bf16.mxu0 0
        %628 = vmatpush2.bf16.msra.mxu0 0
        %629 = vmatprep.subr.bf16.mxu0 0
        %630 = vmatpush2.bf16.msra.mxu0 0
        %631 = vmatprep.subr.bf16.mxu0 0
        %632 = vmatpush2.bf16.msra.mxu0 0
        %633 = vmatprep.mubr.bf16.mxu0 0
        %634 = vmatmul.mubr.bf16.gmra.mxu0 %v543
        %v635 = vpop.f32.mrf.mxu0
        %v636 = vadd.f32 0.0, %v635
        %v637 = vpop.f32.mrf.mxu0
        %v638 = vadd.f32 0.0, %v637
        %v639 = vpop.f32.mrf.mxu0
        %v640 = vadd.f32 0.0, %v639
        %v641 = vpop.f32.mrf.mxu0
        %v642 = vadd.f32 0.0, %v641
        %643 = vmatprep.mubr.bf16.mxu0 0
        %644 = vmatmul.mubr.bf16.gmra.mxu0 %v546
        %v645 = vpop.f32.mrf.mxu0
        %v646 = vadd.f32 0.0, %v645
        %v647 = vpop.f32.mrf.mxu0
        %v648 = vadd.f32 0.0, %v647
        %v649 = vpop.f32.mrf.mxu0
        %v650 = vadd.f32 0.0, %v649
        %v651 = vpop.f32.mrf.mxu0
        %v652 = vadd.f32 0.0, %v651
        %653 = vdwg.mxu0
        %v658 = vunpack.c.l.b16 %v523
        %v659 = vunpack.c.l.b16 %v524
        %v660 = vunpack.c.l.b16 %v525
        %v661 = vunpack.c.l.b16 %v526
        %v662 = vpack.c.b16 %v659, %v658
        %v663 = vpack.c.b16 %v661, %v660
        %vm664 = vcmask 523264
        %v666 = vsel %vm664, %v662, 0
        %v669 = vsel %vm664, %v663, 0
        %671 = vmatprep.subr.bf16.mxu0 0
        %672 = vmatpush1.bf16.msra.mxu0 0
        %673 = vmatprep.subr.bf16.mxu0 0
        %674 = vmatpush1.bf16.msra.mxu0 0
        %675 = vmatprep.subr.bf16.mxu0 0
        %676 = vmatpush1.bf16.msra.mxu0 0
        %677 = vmatprep.subr.bf16.mxu0 0
        %678 = vmatpush1.bf16.msra.mxu0 0
        %679 = vmatprep.subr.bf16.mxu0 %v401
        %680 = vmatpush1.bf16.msra.mxu0 %v400
        %681 = vmatprep.subr.bf16.mxu0 %v397
        %682 = vmatpush1.bf16.msra.mxu0 %v396
        %683 = vmatprep.subr.bf16.mxu0 %v393
        %684 = vmatpush1.bf16.msra.mxu0 %v392
        %685 = vmatprep.subr.bf16.mxu0 %v389
        %686 = vmatpush1.bf16.msra.mxu0 %v388
        %687 = vmatprep.subr.bf16.mxu0 0
        %688 = vmatpush2.bf16.msra.mxu0 0
        %689 = vmatprep.subr.bf16.mxu0 0
        %690 = vmatpush2.bf16.msra.mxu0 0
        %691 = vmatprep.subr.bf16.mxu0 0
        %692 = vmatpush2.bf16.msra.mxu0 0
        %693 = vmatprep.subr.bf16.mxu0 0
        %694 = vmatpush2.bf16.msra.mxu0 0
        %695 = vmatprep.subr.bf16.mxu0 0
        %696 = vmatpush2.bf16.msra.mxu0 0
        %697 = vmatprep.subr.bf16.mxu0 0
        %698 = vmatpush2.bf16.msra.mxu0 0
        %699 = vmatprep.subr.bf16.mxu0 0
        %700 = vmatpush2.bf16.msra.mxu0 0
        %701 = vmatprep.subr.bf16.mxu0 0
        %702 = vmatpush2.bf16.msra.mxu0 0
        %703 = vmatprep.mubr.bf16.mxu0 0
        %704 = vmatmul.mubr.bf16.gmra.mxu0 %v666
        %v705 = vpop.f32.mrf.mxu0
        %v706 = vadd.f32 %v583, %v705
        %v707 = vpop.f32.mrf.mxu0
        %v708 = vadd.f32 %v585, %v707
        %v709 = vpop.f32.mrf.mxu0
        %v710 = vadd.f32 %v587, %v709
        %v711 = vpop.f32.mrf.mxu0
        %v712 = vadd.f32 %v589, %v711
        %713 = vmatprep.mubr.bf16.mxu0 0
        %714 = vmatmul.mubr.bf16.gmra.mxu0 %v669
        %v715 = vpop.f32.mrf.mxu0
        %v716 = vadd.f32 %v593, %v715
        %v717 = vpop.f32.mrf.mxu0
        %v718 = vadd.f32 %v595, %v717
        %v719 = vpop.f32.mrf.mxu0
        %v720 = vadd.f32 %v597, %v719
        %v721 = vpop.f32.mrf.mxu0
        %v722 = vadd.f32 %v599, %v721
        %723 = vdwg.mxu0
        %724 = vmatprep.subr.bf16.mxu0 0
        %725 = vmatpush1.bf16.msra.mxu0 0
        %726 = vmatprep.subr.bf16.mxu0 0
        %727 = vmatpush1.bf16.msra.mxu0 0
        %728 = vmatprep.subr.bf16.mxu0 0
        %729 = vmatpush1.bf16.msra.mxu0 0
        %730 = vmatprep.subr.bf16.mxu0 0
        %731 = vmatpush1.bf16.msra.mxu0 0
        %732 = vmatprep.subr.bf16.mxu0 %v403
        %733 = vmatpush1.bf16.msra.mxu0 %v402
        %734 = vmatprep.subr.bf16.mxu0 %v399
        %735 = vmatpush1.bf16.msra.mxu0 %v398
        %736 = vmatprep.subr.bf16.mxu0 %v395
        %737 = vmatpush1.bf16.msra.mxu0 %v394
        %738 = vmatprep.subr.bf16.mxu0 %v391
        %739 = vmatpush1.bf16.msra.mxu0 %v390
        %740 = vmatprep.subr.bf16.mxu0 0
        %741 = vmatpush2.bf16.msra.mxu0 0
        %742 = vmatprep.subr.bf16.mxu0 0
        %743 = vmatpush2.bf16.msra.mxu0 0
        %744 = vmatprep.subr.bf16.mxu0 0
        %745 = vmatpush2.bf16.msra.mxu0 0
        %746 = vmatprep.subr.bf16.mxu0 0
        %747 = vmatpush2.bf16.msra.mxu0 0
        %748 = vmatprep.subr.bf16.mxu0 0
        %749 = vmatpush2.bf16.msra.mxu0 0
        %750 = vmatprep.subr.bf16.mxu0 0
        %751 = vmatpush2.bf16.msra.mxu0 0
        %752 = vmatprep.subr.bf16.mxu0 0
        %753 = vmatpush2.bf16.msra.mxu0 0
        %754 = vmatprep.subr.bf16.mxu0 0
        %755 = vmatpush2.bf16.msra.mxu0 0
        %756 = vmatprep.mubr.bf16.mxu0 0
        %757 = vmatmul.mubr.bf16.gmra.mxu0 %v666
        %v758 = vpop.f32.mrf.mxu0
        %v759 = vadd.f32 %v636, %v758
        %v760 = vpop.f32.mrf.mxu0
        %v761 = vadd.f32 %v638, %v760
        %v762 = vpop.f32.mrf.mxu0
        %v763 = vadd.f32 %v640, %v762
        %v764 = vpop.f32.mrf.mxu0
        %v765 = vadd.f32 %v642, %v764
        %766 = vmatprep.mubr.bf16.mxu0 0
        %767 = vmatmul.mubr.bf16.gmra.mxu0 %v669
        %v768 = vpop.f32.mrf.mxu0
        %v769 = vadd.f32 %v646, %v768
        %v770 = vpop.f32.mrf.mxu0
        %v771 = vadd.f32 %v648, %v770
        %v772 = vpop.f32.mrf.mxu0
        %v773 = vadd.f32 %v650, %v772
        %v774 = vpop.f32.mrf.mxu0
        %v775 = vadd.f32 %v652, %v774
        %776 = vdwg.mxu0
        %v777 = vld [vmem:[%s4] sm:$0xff]
        %v778 = vld [vmem:[%s4 + $0x8] sm:$0xff]
        %v779 = vld [vmem:[%s4 + $0x10] sm:$0xff]
        %v780 = vld [vmem:[%s4 + $0x18] sm:$0xff]
        %782 = vset.pattern.permute.xlu0 0
        %783 = vperm.xlu0 %782, %v777
        %v784 = vpop.permute.xlu0 %783
        %787 = vset.pattern.permute.xlu0 0
        %788 = vperm.xlu0 %787, %v778
        %v789 = vpop.permute.xlu0 %788
        %792 = vset.pattern.permute.xlu0 0
        %793 = vperm.xlu0 %792, %v779
        %v794 = vpop.permute.xlu0 %793
        %797 = vset.pattern.permute.xlu0 0
        %798 = vperm.xlu0 %797, %v780
        %v799 = vpop.permute.xlu0 %798
        %v801 = vadd.f32 %v706, %v784
        %v802 = vadd.f32 %v708, %v784
        %v803 = vadd.f32 %v759, %v784
        %v804 = vadd.f32 %v761, %v784
        %v805 = vadd.f32 %v710, %v789
        %v806 = vadd.f32 %v712, %v789
        %v807 = vadd.f32 %v763, %v789
        %v808 = vadd.f32 %v765, %v789
        %v809 = vadd.f32 %v716, %v794
        %v810 = vadd.f32 %v718, %v794
        %v811 = vadd.f32 %v769, %v794
        %v812 = vadd.f32 %v771, %v794
        %v813 = vadd.f32 %v720, %v799
        %v814 = vadd.f32 %v722, %v799
        %v815 = vadd.f32 %v773, %v799
        %v816 = vadd.f32 %v775, %v799
        %v817 = vmax.f32 %v801, 0.0
        %v818 = vmax.f32 %v802, 0.0
        %v819 = vmax.f32 %v803, 0.0
        %v820 = vmax.f32 %v804, 0.0
        %v821 = vmax.f32 %v805, 0.0
        %v822 = vmax.f32 %v806, 0.0
        %v823 = vmax.f32 %v807, 0.0
        %v824 = vmax.f32 %v808, 0.0
        %v825 = vmax.f32 %v809, 0.0
        %v826 = vmax.f32 %v810, 0.0
        %v827 = vmax.f32 %v811, 0.0
        %v828 = vmax.f32 %v812, 0.0
        %v829 = vmax.f32 %v813, 0.0
        %v830 = vmax.f32 %v814, 0.0
        %v831 = vmax.f32 %v815, 0.0
        %v832 = vmax.f32 %v816, 0.0
        %v833 = vld [vmem:[%s5] sm:$0xff]
        %v834 = vld [vmem:[%s5 + $0x8] sm:$0xff]
        %v835 = vld [vmem:[%s5 + $0x10] sm:$0xff]
        %v836 = vld [vmem:[%s5 + $0x18] sm:$0xff]
        %838 = vset.pattern.permute.xlu0 0
        %839 = vperm.xlu0 %838, %v833
        %v840 = vpop.permute.xlu0 %839
        %843 = vset.pattern.permute.xlu0 0
        %844 = vperm.xlu0 %843, %v834
        %v845 = vpop.permute.xlu0 %844
        %848 = vset.pattern.permute.xlu0 0
        %849 = vperm.xlu0 %848, %v835
        %v850 = vpop.permute.xlu0 %849
        %853 = vset.pattern.permute.xlu0 0
        %854 = vperm.xlu0 %853, %v836
        %v855 = vpop.permute.xlu0 %854
        %v857 = vmul.f32 %v817, %v840
        %v858 = vmul.f32 %v818, %v840
        %v859 = vmul.f32 %v819, %v840
        %v860 = vmul.f32 %v820, %v840
        %v861 = vmul.f32 %v821, %v845
        %v862 = vmul.f32 %v822, %v845
        %v863 = vmul.f32 %v823, %v845
        %v864 = vmul.f32 %v824, %v845
        %v865 = vmul.f32 %v825, %v850
        %v866 = vmul.f32 %v826, %v850
        %v867 = vmul.f32 %v827, %v850
        %v868 = vmul.f32 %v828, %v850
        %v869 = vmul.f32 %v829, %v855
        %v870 = vmul.f32 %v830, %v855
        %v871 = vmul.f32 %v831, %v855
        %v872 = vmul.f32 %v832, %v855
        %v873 = vadd.f32 %v857, %v861
        %v874 = vadd.f32 %v873, %v865
        %v875 = vadd.f32 %v874, %v869
        %v876 = vrot.slane %v875, 4
        %v877 = vadd.f32 %v875, %v876
        %v878 = vrot.slane %v877, 2
        %v879 = vadd.f32 %v877, %v878
        %v880 = vrot.slane %v879, 1
        %v881 = vadd.f32 %v879, %v880
        %v882 = vadd.f32 %v858, %v862
        %v883 = vadd.f32 %v882, %v866
        %v884 = vadd.f32 %v883, %v870
        %v885 = vrot.slane %v884, 4
        %v886 = vadd.f32 %v884, %v885
        %v887 = vrot.slane %v886, 2
        %v888 = vadd.f32 %v886, %v887
        %v889 = vrot.slane %v888, 1
        %v890 = vadd.f32 %v888, %v889
        %v891 = vadd.f32 %v859, %v863
        %v892 = vadd.f32 %v891, %v867
        %v893 = vadd.f32 %v892, %v871
        %v894 = vrot.slane %v893, 4
        %v895 = vadd.f32 %v893, %v894
        %v896 = vrot.slane %v895, 2
        %v897 = vadd.f32 %v895, %v896
        %v898 = vrot.slane %v897, 1
        %v899 = vadd.f32 %v897, %v898
        %v900 = vadd.f32 %v860, %v864
        %v901 = vadd.f32 %v900, %v868
        %v902 = vadd.f32 %v901, %v872
        %v903 = vrot.slane %v902, 4
        %v904 = vadd.f32 %v902, %v903
        %v905 = vrot.slane %v904, 2
        %v906 = vadd.f32 %v904, %v905
        %v907 = vrot.slane %v906, 1
        %v908 = vadd.f32 %v906, %v907
        %s909 = sld [smem:[#allocation2]]
        %v910 = vstv %s909
        %v911 = vadd.f32 %v881, %v910
        %v912 = vadd.f32 %v890, %v910
        %v913 = vadd.f32 %v899, %v910
        %v914 = vadd.f32 %v908, %v910
        %v919 = vcombine.low %v911, %v912
        %v920 = vcombine.low %v913, %v914
        %v922 = vunpack.c.l.s4 1966171168
        %v923 = vunpack.c.0.s8 %v922
        %v924 = vlaneseq
        %v925 = vshrl.u32 %v924, 7
        %v926 = vsub.s32 %v923, %v925
        %v927 = vrot.slane %v919, %v926
        %v929 = vunpack.c.l.s4 1966171168
        %v930 = vunpack.c.0.s8 %v929
        %v931 = vlaneseq
        %v932 = vshrl.u32 %v931, 7
        %v933 = vsub.s32 %v930, %v932
        %v934 = vrot.slane %v920, %v933
        %v935 = vcombine.low %v927, %v934
        %v937 = vunpack.c.l.s4 1966171168
        %v938 = vunpack.c.0.s8 %v937
        %v939 = vlaneseq
        %v940 = vshrl.u32 %v939, 7
        %v941 = vsub.s32 %v938, %v940
        %v942 = vrot.slane %v935, %v941
        %v944 = vlaneseq
        %vm945 = vcmp.ge.s32.totalorder %v944, 0
        %vm946 = vcmp.lt.s32.totalorder %v944, 512
        %vm947 = vmand %vm945, %vm946
        %948 = vst.msk [vmem:[%s285] sm:$0xf] %vm947, %v942
        %s949 = sand.u32 %s187, 1
        %s950 = scalar_lea.sflag [#allocation4], %s949
        %s951 = sand.u32 %s187, 1
        %s952 = smul.addr %s951, 4
        %s953 = scalar_lea.vmem [#allocation3], %s952
        // Predicated region
        $region49: #{edge_decoder_forward.1} parent=47 // pred_check
          %p954 = pneg %p197
        $region50: #{edge_decoder_forward.1} parent=47 // pred_check_branch
          %956 = sbr.rel (%p954) target = $region52
        $region51: #{edge_decoder_forward.1} parent=47 // pred_region
          %s957 = smul.u32 4, %s22
          %s959 = ssub.s32 64, 64
          %960 = vsyncadd %s950, %s959
          %s961 = smul.addr %s957, 16
          %s962 = scalar_lea.hbm %s7, %s961
          %s964 = sshll.u32 %s953, 4
          %s965 = int_to_ptr.vmem [resolvable:$true] %s964
          %967 = dma.vmem_to_hbm [thread:$0]  %s965, 64, %s962, %s950
        $region52: #{edge_decoder_forward.1} parent=47 // pred_fallthru
          _
      $region48: #{edge_decoder_forward.1} parent=5 // pred_fallthru
        _
      %p968 = scmp.le.s32.totalorder 2, %s17
      // Predicated region
      $region53: #{edge_decoder_forward.1} parent=5 // pred_check
        %p969 = pneg %p968
      $region54: #{edge_decoder_forward.1} parent=5 // pred_check_branch
        %971 = sbr.rel (%p969) target = $region56
      $region55: #{edge_decoder_forward.1} parent=5 // pred_region
        %s972 = ssub.s32 %s17, 2
        // Predicated region
        $region57: #{edge_decoder_forward.1} parent=55 // pred_check
          %p973 = pneg %p203
        $region58: #{edge_decoder_forward.1} parent=55 // pred_check_branch
          %975 = sbr.rel (%p973) target = $region60
        $region59: #{edge_decoder_forward.1} parent=55 // pred_region
          %s976 = sand.u32 %s188, 1
          %s977 = scalar_lea.sflag [#allocation4], %s976
          %s978 = sand.u32 %s188, 1
          %s979 = smul.addr %s978, 4
          %s980 = scalar_lea.vmem [#allocation3], %s979
          %981 = dma.done %s977, 64
        $region60: #{edge_decoder_forward.1} parent=55 // pred_fallthru
          _
      $region56: #{edge_decoder_forward.1} parent=5 // pred_fallthru
        _
    $region6: #{edge_decoder_forward.1} parent=1 // loop_footer
      %s21 = sadd.s32 1, %s17
    $region7: #{edge_decoder_forward.1} parent=1 // loop_footer_branch
      %16 = sbr.rel target = $region3
    $region8: #{edge_decoder_forward.1} parent=1 // loop_exit
      _
    %982 = vsyncpa [#allocation4], 1
    %s983 = scalar_lea.sflag [#allocation4], 1
    %984 = vsyncpa %s983, 1

</llo_original>
